<compile_context>
chip_gen: v5e
topology: v5e:2x2
jax: 0.10.0
libtpu: 0.0.40
codegen_flags: <defaults>
</compile_context>

<pallas_src>
import functools

import jax
import jax.numpy as jnp
from jax.experimental import pallas as pl
from jax.experimental.pallas import tpu as pltpu


# --------------------------- budgets / tiling ------------------------------ #

def _vmem_budget_bytes():
    """Scoped-VMEM budget: ~3/4 of physical VMEM, capped at 64 MiB.
    -> ~64 MiB on v5e/v6e (128 MiB physical), ~48 MiB on v7x (64 MiB per TC)."""
    try:
        phys = pltpu.get_tpu_info().vmem_capacity_bytes
    except Exception:
        phys = 64 * 1024 * 1024            # conservative fallback (v7x per-TC)
    return int(min(phys * 3 // 4, 64 * 1024 * 1024))


_VMEM_LIMIT_BYTES = _vmem_budget_bytes()
# Resident footprint of the streaming add ~= 2 buffers x (x block + out block)
# = 4 x block (+ tiny resident eff column), so keep the block at <= budget/6.
_TARGET_BLOCK_BYTES = int(min(8 * 1024 * 1024, _VMEM_LIMIT_BYTES // 6))
_MIN_GRID_STEPS = 4                         # >= 2 TCs on v7x, enough to pipeline


def _sublane_rows(dtype):
    """Sublane packing for the dtype: 8 (f32), 16 (bf16), 32 (int8/fp8)."""
    return {4: 8, 2: 16, 1: 32}.get(jnp.dtype(dtype).itemsize, 8)


def _pick_tiles(R, L, dtype):
    """Pick (row_tile, lane_tile) for a (R, L) streaming kernel."""
    itemsize = jnp.dtype(dtype).itemsize
    sub = _sublane_rows(dtype)
    min_rows = min(R, sub)

    # Lane tile: only when L is 128-aligned AND even a minimum-row full-L block
    # exceeds the target.  tl must divide L exactly (keeps the warm-path
    # reduction free of padded-lane garbage) and be a multiple of 128.
    tl = L
    if L % 128 == 0 and min_rows * L * itemsize > _TARGET_BLOCK_BYTES:
        n128 = L // 128
        budget_128 = max(1, _TARGET_BLOCK_BYTES // (min_rows * itemsize * 128))
        best = 1
        for d in range(1, n128 + 1):
            if n128 % d == 0 and d <= budget_128:
                best = d
        tl = best * 128
    # TODO(synk): repack path for huge H*W that is NOT a multiple of 128
    # (fold spatial into a 128-multiple last dim); such shapes currently fall
    # back to a full-L block, which can exceed VMEM on v7x and issues masked
    # vst.msk stores.

    # Row tile: multiple of the dtype's sublane packing, sized to the target.
    rows = _TARGET_BLOCK_BYTES // max(1, tl * itemsize)
    rows = max(sub, (rows // sub) * sub)
    rows = min(rows, R)
    if R <= sub:
        rows = R                              # block dim == full array dim: allowed

    # Guarantee a multi-step grid (pipelining + v7x megacore sharding) when the
    # shape allows splitting; grid=(1,) serializes DMA-in -> compute -> DMA-out.
    def _steps(r):
        return (-(-R // r)) * (-(-L // tl))

    while _steps(rows) < _MIN_GRID_STEPS and rows > sub:
        half = max(sub, ((rows // 2) // sub) * sub)
        if half == rows:
            break
        rows = half
    return rows, tl


# ------------------------------- kernels ----------------------------------- #

def _apply_bias_kernel(tr, x_ref, eff_ref, out_ref):
    """out = x + per-(n, c) effective bias, broadcast over the lane/spatial dim.

    eff_ref holds the whole (row-padded) bias column, resident in VMEM across
    the grid (constant index_map); slice this block's rows in-kernel.
    """
    start = pl.multiple_of(pl.program_id(0) * tr, tr)
    out_ref[...] = x_ref[...] + eff_ref[pl.ds(start, tr), :]


def _row_sum_kernel(x_ref, sum_ref):
    """Per-row (per (n, c)) sum, accumulated in f32 across the lane grid axis."""
    @pl.when(pl.program_id(1) == 0)
    def _():
        sum_ref[...] = jnp.zeros_like(sum_ref)
    sum_ref[...] += jnp.sum(x_ref[...].astype(jnp.float32), axis=1, keepdims=True)


# --------------------------- pallas_call wrappers -------------------------- #

def _apply_bias_call(x2d, eff_col, donate_x=False):
    R, L = x2d.shape
    tr, tl = _pick_tiles(R, L, x2d.dtype)
    gr, gl = pl.cdiv(R, tr), pl.cdiv(L, tl)

    # Pad the bias column to a whole number of row tiles so the in-kernel
    # pl.ds slice never reads out of bounds on the resident VMEM ref.
    r_pad = gr * tr
    if r_pad != R:
        eff_col = jnp.pad(eff_col, ((0, r_pad - R), (0, 0)))

    kernel = functools.partial(_apply_bias_kernel, tr)
    return pl.pallas_call(
        kernel,
        out_shape=jax.ShapeDtypeStruct((R, L), x2d.dtype),
        grid=(gr, gl),
        in_specs=[
            pl.BlockSpec((tr, tl), lambda i, j: (i, j)),
            # Whole bias column stays resident in VMEM: constant index_map
            # -> DMA'd exactly once, no per-step descriptor/sync overhead.
            pl.BlockSpec((r_pad, 1), lambda i, j: (0, 0)),
        ],
        out_specs=pl.BlockSpec((tr, tl), lambda i, j: (i, j)),
        compiler_params=pltpu.CompilerParams(
            dimension_semantics=("parallel", "parallel"),
            vmem_limit_bytes=_VMEM_LIMIT_BYTES,
        ),
        # Footprint-only win (HBM traffic unchanged): alias x -> out when the
        # caller can donate x.
        input_output_aliases=({0: 0} if donate_x else {}),
    )(x2d, eff_col)


def _row_sum_call(x2d):
    R, L = x2d.shape
    tr, tl = _pick_tiles(R, L, x2d.dtype)
    gr, gl = pl.cdiv(R, tr), pl.cdiv(L, tl)
    return pl.pallas_call(
        _row_sum_kernel,
        out_shape=jax.ShapeDtypeStruct((R, 1), jnp.float32),
        grid=(gr, gl),
        in_specs=[pl.BlockSpec((tr, tl), lambda i, j: (i, j))],
        # Output block resident across the lane (reduction) axis -> "arbitrary".
        out_specs=pl.BlockSpec((tr, 1), lambda i, j: (i, 0)),
        compiler_params=pltpu.CompilerParams(
            dimension_semantics=("parallel", "arbitrary"),
            vmem_limit_bytes=_VMEM_LIMIT_BYTES,
        ),
    )(x2d)


# ---------------------------- jitted forwards ------------------------------ #

@jax.jit
def _stable_forward(x, bias, init_mean):
    N, C, H, W = x.shape
    R, L = N * C, H * W
    x2d = x.reshape(R, L)                     # contiguous reshape, no transpose
    eff = (bias - init_mean).astype(x.dtype)  # (1, C), pre-cast on host side
    eff_col = jnp.broadcast_to(eff, (N, C)).reshape(R, 1)
    return _apply_bias_call(x2d, eff_col).reshape(N, C, H, W)


@jax.jit
def _warm_forward(x, bias, init_mean, count_f32):
    N, C, H, W = x.shape
    R, L = N * C, H * W
    x2d = x.reshape(R, L)
    row_sums = _row_sum_call(x2d)                                   # (R, 1) f32
    mu = (row_sums.reshape(N, C).sum(axis=0) / (N * H * W)).reshape(1, C)
    new_mean = init_mean + (mu - init_mean) / (count_f32 + 1.0)
    eff = (jnp.float32(0.01) * bias - new_mean).astype(x.dtype)     # UPDATED mean
    eff_col = jnp.broadcast_to(eff, (N, C)).reshape(R, 1)
    out2d = _apply_bias_call(x2d, eff_col)
    return out2d.reshape(N, C, H, W), new_mean


# ------------------------------- module ------------------------------------ #

class AddBiasPallas:
    """Stateful wrapper mirroring the PyTorch AddBias module (NCHW variant).

    Subclass-defined attributes of the PyTorch module are assumed to be:
      self.dim = (0, 2, 3)                  (per-channel mean over N, H, W)
      self._bias:    (1, num_features)      learnable bias (deterministic init here)
      self.init_mean:(1, num_features)      running-mean buffer, init zeros
      self.count:    int buffer, init 0

    count / init_mean are host-side state; the count branch stays outside jit
    so the two traced paths (warm / stable) never retrace.
    """

    def __init__(self, num_features, threshold=8, key=None):
        self.num_features = num_features
        self.threshold = threshold
        self.count = 0
        if key is None:
            key = jax.random.PRNGKey(0)
        # Deterministic synthetic parameter init (no checkpoint load).
        self._bias = 0.1 * jax.random.normal(key, (1, num_features), dtype=jnp.float32)
        self.init_mean = jnp.zeros((1, num_features), dtype=jnp.float32)

    def __call__(self, x):
        N, C, H, W = x.shape
        assert C == self.num_features
        if self.count < self.threshold:
            out, new_mean = _warm_forward(
                x, self._bias, self.init_mean,
                jnp.asarray(self.count, dtype=jnp.float32))
            self.init_mean = new_mean
            self.count += 1
            return out
        return _stable_forward(x, self._bias, self.init_mean)


# ------------------------------ validation --------------------------------- #

def _reference_step(x, bias, init_mean, count, threshold):
    """Pure-JAX reference of one forward (NCHW), for validation."""
    if count < threshold:
        mu = jnp.mean(x.astype(jnp.float32), axis=(0, 2, 3)).reshape(1, -1)
        new_mean = init_mean + (mu - init_mean) / (count + 1)
        eff = 0.01 * bias - new_mean
        return x + eff.reshape(1, -1, 1, 1), new_mean, count + 1
    eff = bias - init_mean
    return x + eff.reshape(1, -1, 1, 1), init_mean, count


if __name__ == "__main__":
    key = jax.random.PRNGKey(0)
    k_bias, k_x = jax.random.split(key)

    N, C, H, W = 2, 4, 16, 16
    threshold = 3  # small threshold so both warm and stable paths are exercised

    mod = AddBiasPallas(num_features=C, threshold=threshold, key=k_bias)

    ref_mean = jnp.zeros((1, C), dtype=jnp.float32)
    ref_count = 0

    x_keys = jax.random.split(k_x, threshold + 2)
    y = None
    for step in range(threshold + 2):  # warm path x threshold, then stable path twice
        x = jax.random.normal(x_keys[step], (N, C, H, W), dtype=jnp.float32)
        y = mod(x)
        jax.block_until_ready(y)

        ref_y, ref_mean, ref_count = _reference_step(
            x, mod._bias, ref_mean, ref_count, threshold)

        assert jnp.allclose(y, ref_y, atol=1e-5, rtol=1e-5), f"mismatch at step {step}"
        assert jnp.allclose(mod.init_mean, ref_mean, atol=1e-6, rtol=1e-5), \
            f"mean mismatch at step {step}"

    jax.block_until_ready(y)
    print("KERNEL_OK")
</pallas_src>

<mosaic_0001>
module attributes {stable_mosaic.version = 11 : i64} {
  func.func @_row_sum_kernel(%arg0: i32, %arg1: i32, %arg2: memref<8x256xf32, #tpu.memory_space<vmem>>, %arg3: memref<8x1xf32, #tpu.memory_space<vmem>>) attributes {dimension_semantics = [#tpu.dimension_semantics<parallel>, #tpu.dimension_semantics<arbitrary>], iteration_bounds = array<i64: 1, 1>, scalar_prefetch = 0 : i64, scratch_operands = 0 : i64, tpu.core_type = #tpu.core_type<tc>, window_params = [{transform_indices = @transform_0, window_bounds = array<i64: 8, 256>}, {transform_indices = @transform_1, window_bounds = array<i64: 8, 1>}]} {
    %c0_i32 = arith.constant 0 : i32
    %0 = arith.cmpi eq, %arg1, %c0_i32 : i32
    %1 = arith.extui %0 : i1 to i32
    %c0_i32_0 = arith.constant 0 : i32
    %2 = arith.cmpi ne, %1, %c0_i32_0 : i32
    scf.if %2 {
      %cst_6 = arith.constant 0.000000e+00 : f32
      %9 = vector.broadcast %cst_6 : f32 to vector<8x1xf32>
      %c0_7 = arith.constant 0 : index
      %c0_8 = arith.constant 0 : index
      %10 = vector.load %arg3[%c0_7, %c0_8] : memref<8x1xf32, #tpu.memory_space<vmem>>, vector<8x1xf32>
      tpu.vector_store %arg3[%c0_7, %c0_8], %9 {strides = array<i32>} : memref<8x1xf32, #tpu.memory_space<vmem>>, vector<8x1xf32>,
    } else {
    }
    %c0 = arith.constant 0 : index
    %c0_1 = arith.constant 0 : index
    %3 = vector.load %arg3[%c0, %c0_1] : memref<8x1xf32, #tpu.memory_space<vmem>>, vector<8x1xf32>
    %c0_2 = arith.constant 0 : index
    %c0_3 = arith.constant 0 : index
    %4 = vector.load %arg2[%c0_2, %c0_3] : memref<8x256xf32, #tpu.memory_space<vmem>>, vector<8x256xf32>
    %cst = arith.constant dense<0.000000e+00> : vector<8xf32>
    %5 = vector.multi_reduction <add>, %4, %cst [1] : vector<8x256xf32> to vector<8xf32>
    %6 = vector.shape_cast %5 : vector<8xf32> to vector<8x1xf32>
    %7 = arith.addf %3, %6 : vector<8x1xf32>
    %c0_4 = arith.constant 0 : index
    %c0_5 = arith.constant 0 : index
    %8 = vector.load %arg3[%c0_4, %c0_5] : memref<8x1xf32, #tpu.memory_space<vmem>>, vector<8x1xf32>
    tpu.vector_store %arg3[%c0_4, %c0_5], %7 {strides = array<i32>} : memref<8x1xf32, #tpu.memory_space<vmem>>, vector<8x1xf32>,
    return
  }
  func.func @transform_0(%arg0: i32, %arg1: i32) -> (i32, i32) {
    %c0_i32 = arith.constant 0 : i32
    return %arg0, %arg1 : i32, i32
  }
  func.func @transform_1(%arg0: i32, %arg1: i32) -> (i32, i32) {
    %c0_i32 = arith.constant 0 : i32
    %c0_i32_0 = arith.constant 0 : i32
    return %arg0, %c0_i32 : i32, i32
  }
}

module attributes {stable_mosaic.version = 11 : i64} {
  func.func @_apply_bias_kernel(%arg0: i32, %arg1: i32, %arg2: memref<8x256xf32, #tpu.memory_space<vmem>>, %arg3: memref<8x1xf32, #tpu.memory_space<vmem>>, %arg4: memref<8x256xf32, #tpu.memory_space<vmem>>) attributes {dimension_semantics = [#tpu.dimension_semantics<parallel>, #tpu.dimension_semantics<parallel>], iteration_bounds = array<i64: 1, 1>, scalar_prefetch = 0 : i64, scratch_operands = 0 : i64, tpu.core_type = #tpu.core_type<tc>, window_params = [{transform_indices = @transform_0, window_bounds = array<i64: 8, 256>}, {pipeline_mode = #tpu.pipeline_mode<synchronous>, transform_indices = @transform_1, window_bounds = array<i64: 8, 1>}, {transform_indices = @transform_2, window_bounds = array<i64: 8, 256>}]} {
    %c8_i32 = arith.constant 8 : i32
    %0 = arith.muli %arg0, %c8_i32 : i32
    %1 = tpu.assume_multiple %0, 8 : i32
    %c0 = arith.constant 0 : index
    %c0_0 = arith.constant 0 : index
    %2 = vector.load %arg2[%c0, %c0_0] : memref<8x256xf32, #tpu.memory_space<vmem>>, vector<8x256xf32>
    %3 = arith.index_cast %1 : i32 to index
    %c0_1 = arith.constant 0 : index
    %4 = vector.load %arg3[%3, %c0_1] : memref<8x1xf32, #tpu.memory_space<vmem>>, vector<8x1xf32>
    %5 = vector.broadcast %4 : vector<8x1xf32> to vector<8x256xf32>
    %6 = arith.addf %2, %5 : vector<8x256xf32>
    %c0_2 = arith.constant 0 : index
    %c0_3 = arith.constant 0 : index
    %7 = vector.load %arg4[%c0_2, %c0_3] : memref<8x256xf32, #tpu.memory_space<vmem>>, vector<8x256xf32>
    tpu.vector_store %arg4[%c0_2, %c0_3], %6 {strides = array<i32>} : memref<8x256xf32, #tpu.memory_space<vmem>>, vector<8x256xf32>,
    return
  }
  func.func @transform_0(%arg0: i32, %arg1: i32) -> (i32, i32) {
    %c0_i32 = arith.constant 0 : i32
    return %arg0, %arg1 : i32, i32
  }
  func.func @transform_1(%arg0: i32, %arg1: i32) -> (i32, i32) {
    %c0_i32 = arith.constant 0 : i32
    %c0_i32_0 = arith.constant 0 : i32
    %c0_i32_1 = arith.constant 0 : i32
    return %c0_i32, %c0_i32_0 : i32, i32
  }
  func.func @transform_2(%arg0: i32, %arg1: i32) -> (i32, i32) {
    %c0_i32 = arith.constant 0 : i32
    return %arg0, %arg1 : i32, i32
  }
}

</mosaic_0001>

<llo_original>
// kernel: _warm_forward.2
$region0: #{_warm_forward.2}
  #allocation0 [shape = 'u32[]', space=smem, size = 0x4, offset = 0x4, fixed_abs, tag = 'smem constant byte address 0x4 - core index']
  #allocation1 [shape = 'u32[72,128]{1,0:T(1,128)}', space=vmem, size = 0x9000, scoped, tag = 'internal scratch']
  %s0 = inlined_call_operand.vmem [shape: f32[8,256], index: 0, kind: input, shape index: {}]
  %s1 = inlined_call_operand.vmem [shape: f32[8,1], index: 1, kind: output, shape index: {}]
  %s2 = sld [smem:[#allocation0]]
  $region18: #{_warm_forward.2} parent=0
    _
  %s4 = ssub.s32 1, %s2
  %s5 = scalar_select 0, %s4, %s2
  // Predicated region
  $region2: #{_warm_forward.2} parent=0 // pred_check
    _
  $region3: #{_warm_forward.2} parent=0 // pred_check_branch
    %7 = sbr.rel (0) target = $region5
  $region4: #{_warm_forward.2} parent=0 // pred_region
    _
  $region5: #{_warm_forward.2} parent=0 // pred_fallthru
    _
  %p8 = scmp.eq.s32.totalorder 0, 0
  // Predicated region
  $region6: #{_warm_forward.2} parent=0 // pred_check
    %p9 = pneg %p8
  $region7: #{_warm_forward.2} parent=0 // pred_check_branch
    %11 = sbr.rel (%p9) target = $region9
  $region8: #{_warm_forward.2} parent=0 // pred_region
    %vm12 = vcmask 7168
    %13 = vst.msk [vmem:[%s1] sm:$0xff] %vm12, 0.0
  $region9: #{_warm_forward.2} parent=0 // pred_fallthru
    _
  %v14 = vld [vmem:[%s1] sm:$0xff]
  %v15 = vld [vmem:[%s0] sm:$0xff]
  %v16 = vld [vmem:[%s0 + $0x8] sm:$0xff]
  %v17 = vadd.f32 %v15, %v16
  %18 = vadd.xlane.f32.xlu0 %v17
  %v19 = vpop.xlane.xlu0 %18
  %v20 = vadd.f32 %v14, %v19
  %vm21 = vcmask 7168
  %22 = vst.msk [vmem:[%s1] sm:$0xff] %vm21, %v20
  // Predicated region
  $region10: #{_warm_forward.2} parent=0 // pred_check
    _
  $region11: #{_warm_forward.2} parent=0 // pred_check_branch
    %24 = sbr.rel (0) target = $region13
  $region12: #{_warm_forward.2} parent=0 // pred_region
    _
  $region13: #{_warm_forward.2} parent=0 // pred_fallthru
    _
  // Predicated region
  $region14: #{_warm_forward.2} parent=0 // pred_check
    _
  $region15: #{_warm_forward.2} parent=0 // pred_check_branch
    %26 = sbr.rel (0) target = $region17
  $region16: #{_warm_forward.2} parent=0 // pred_region
    _
  $region17: #{_warm_forward.2} parent=0 // pred_fallthru
    _

// kernel: _warm_forward.3
$region0: #{_warm_forward.3}
  #allocation0 [shape = 'u32[]', space=smem, size = 0x4, offset = 0x4, fixed_abs, tag = 'smem constant byte address 0x4 - core index']
  #allocation1 [shape = 'u32[72,128]{1,0:T(1,128)}', space=vmem, size = 0x9000, scoped, tag = 'internal scratch']
  %s0 = inlined_call_operand.vmem [shape: f32[8,256], index: 0, kind: input, shape index: {}]
  %s1 = inlined_call_operand.vmem [shape: f32[8,1], index: 1, kind: input, shape index: {}]
  %s2 = inlined_call_operand.vmem [shape: f32[8,256], index: 2, kind: output, shape index: {}]
  %s3 = sld [smem:[#allocation0]]
  $region18: #{_warm_forward.3} parent=0
    _
  %s5 = ssub.s32 1, %s3
  %s6 = scalar_select 0, %s5, %s3
  // Predicated region
  $region2: #{_warm_forward.3} parent=0 // pred_check
    _
  $region3: #{_warm_forward.3} parent=0 // pred_check_branch
    %8 = sbr.rel (0) target = $region5
  $region4: #{_warm_forward.3} parent=0 // pred_region
    _
  $region5: #{_warm_forward.3} parent=0 // pred_fallthru
    _
  // Predicated region
  $region6: #{_warm_forward.3} parent=0 // pred_check
    _
  $region7: #{_warm_forward.3} parent=0 // pred_check_branch
    %10 = sbr.rel (0) target = $region9
  $region8: #{_warm_forward.3} parent=0 // pred_region
    _
  $region9: #{_warm_forward.3} parent=0 // pred_fallthru
    _
  %s11 = smul.u32 0, 8
  %v12 = vld [vmem:[%s0] sm:$0xff]
  %v13 = vld [vmem:[%s0 + $0x8] sm:$0xff]
  %s14 = scalar_lea.vmem %s1, %s11
  %v15 = vld [vmem:[%s14] sm:$0xff]
  %17 = vset.pattern.permute.xlu0 0
  %18 = vperm.xlu0 %17, %v15
  %v19 = vpop.permute.xlu0 %18
  %v21 = vadd.f32 %v12, %v19
  %v22 = vadd.f32 %v13, %v19
  %23 = vst [vmem:[%s2] sm:$0xff] %v21
  %24 = vst [vmem:[%s2 + $0x8] sm:$0xff] %v22
  // Predicated region
  $region10: #{_warm_forward.3} parent=0 // pred_check
    _
  $region11: #{_warm_forward.3} parent=0 // pred_check_branch
    %26 = sbr.rel (0) target = $region13
  $region12: #{_warm_forward.3} parent=0 // pred_region
    _
  $region13: #{_warm_forward.3} parent=0 // pred_fallthru
    _
  // Predicated region
  $region14: #{_warm_forward.3} parent=0 // pred_check
    _
  $region15: #{_warm_forward.3} parent=0 // pred_check_branch
    %28 = sbr.rel (0) target = $region17
  $region16: #{_warm_forward.3} parent=0 // pred_region
    _
  $region17: #{_warm_forward.3} parent=0 // pred_fallthru
    _

</llo_original>
